<compile_context>
chip_gen: v6e
topology: v6e:2x2x1
jax: 0.10.0
libtpu: 0.0.40
codegen_flags: <defaults>
</compile_context>

<pallas_src>
import jax
import jax.numpy as jnp
from jax.experimental import pallas as pl
from jax.experimental.pallas import tpu as pltpu

_LANE = 128
_SUBLANE = 8


def _round_up(x, m):
    return (x + m - 1) // m * m


def _default_num_batch_tiles():
    """1 grid step on single-TC chips (v5e/v6e); 2 on v7x so both TCs get work."""
    try:
        kind = jax.devices()[0].device_kind.lower()
    except Exception:
        return 1
    return 2 if ("v7" in kind or "7x" in kind) else 1


def _make_encoder_kernel(n_layers):
    """Fused (Linear -> ReLU)^n for one batch tile; bf16 MXU, f32 epilogue."""

    def kernel(*refs):
        if n_layers > 1:
            x_ref, w0_ref, w_rest_ref, b_ref, o_ref = refs
        else:
            x_ref, w0_ref, b_ref, o_ref = refs
            w_rest_ref = None

        h = x_ref[...].astype(jnp.bfloat16)  # cast f32 -> bf16 in-kernel (no wrapper op)
        for i in range(n_layers):
            w = w0_ref[...] if i == 0 else w_rest_ref[i - 1]
            acc = jnp.dot(h, w, preferred_element_type=jnp.float32)  # bf16 MXU, f32 acc
            acc = jnp.maximum(acc + b_ref[i], 0.0)                   # f32 bias + ReLU (VPU)
            # nn.Dropout: identity at inference time.
            # TODO(synk): training-mode dropout would need pltpu.prng_seed /
            # prng_random_bits masking; this kernel implements eval semantics.
            if i < n_layers - 1:
                h = acc.astype(jnp.bfloat16)
            else:
                o_ref[...] = acc.astype(o_ref.dtype)

    return kernel


def prepare_encoder_params(params):
    """Stack/pad parameters for the kernel.

    params: list of (W, b) with W: (in, out) f32, b: (1, out) f32, layer order.
    Returns dict with:
      w0     : (d_in0, d_pad) bf16     -- layer-0 weight, true K (no K padding)
      w_rest : (n_layers-1, d_pad, d_pad) bf16 or None -- layers 1.. stacked
      b      : (n_layers, 1, d_pad) f32 -- all biases stacked
    All output / hidden feature dims zero-padded to d_pad = round_up(max, 128).
    """
    n_layers = len(params)
    d_in0 = params[0][0].shape[0]
    d_pad = _round_up(max(w.shape[1] for w, _ in params), _LANE)

    w0_raw, _ = params[0]
    w0 = (
        jnp.zeros((d_in0, d_pad), jnp.bfloat16)
        .at[:, : w0_raw.shape[1]]
        .set(w0_raw.astype(jnp.bfloat16))
    )

    w_rest = None
    if n_layers > 1:
        w_rest = jnp.zeros((n_layers - 1, d_pad, d_pad), jnp.bfloat16)
        for i, (w, _) in enumerate(params[1:]):
            w_rest = w_rest.at[i, : w.shape[0], : w.shape[1]].set(w.astype(jnp.bfloat16))

    b_all = jnp.zeros((n_layers, 1, d_pad), jnp.float32)
    for i, (_, b) in enumerate(params):
        b_all = b_all.at[i, 0, : b.shape[-1]].set(b.reshape(-1).astype(jnp.float32))

    return {
        "w0": w0,
        "w_rest": w_rest,
        "b": b_all,
        "n_layers": n_layers,
        "d_in0": d_in0,
        "d_pad": d_pad,
        "out_dims": [w.shape[1] for w, _ in params],
    }


def encoder_forward(x, prep, *, num_batch_tiles=None, out_dtype=jnp.bfloat16):
    """Run the fused encoder kernel.

    x: (batch, window_size) float32.
    Returns the PADDED output (batch_p, d_pad); valid region is
    [:batch, :latent_dim]. Slice lazily at the consumer to avoid an extra
    HBM roundtrip right after the kernel.
    """
    n_layers = prep["n_layers"]
    d_in0 = prep["d_in0"]
    d_pad = prep["d_pad"]

    batch, d_in = x.shape
    assert d_in == d_in0, (d_in, d_in0)

    if num_batch_tiles is None:
        num_batch_tiles = _default_num_batch_tiles()
    num_batch_tiles = max(1, int(num_batch_tiles))

    tile_b = _round_up(pl.cdiv(batch, num_batch_tiles), _SUBLANE)
    batch_p = tile_b * num_batch_tiles
    if batch_p != batch:
        # Rows-only zero pad (cheap); feature dim untouched.
        x = jnp.pad(x, ((0, batch_p - batch), (0, 0)))

    args = [x, prep["w0"]]
    in_specs = [
        pl.BlockSpec((tile_b, d_in0), lambda i: (i, 0)),            # batch-tiled input
        pl.BlockSpec(prep["w0"].shape, lambda i: (0, 0)),           # VMEM-resident
    ]
    if n_layers > 1:
        args.append(prep["w_rest"])
        in_specs.append(pl.BlockSpec(prep["w_rest"].shape, lambda i: (0, 0, 0)))
    args.append(prep["b"])
    in_specs.append(pl.BlockSpec(prep["b"].shape, lambda i: (0, 0, 0)))

    # Advisory cost hint for XLA's scheduler (kernel is overhead/latency bound).
    flops = 2 * batch_p * (d_in0 * d_pad + (n_layers - 1) * d_pad * d_pad)
    bytes_accessed = (
        batch_p * d_in0 * 4                                  # x (f32)
        + prep["w0"].size * 2                                # w0 (bf16)
        + (prep["w_rest"].size * 2 if n_layers > 1 else 0)   # stacked weights (bf16)
        + prep["b"].size * 4                                 # biases (f32)
        + batch_p * d_pad * jnp.dtype(out_dtype).itemsize    # output
    )

    kernel = _make_encoder_kernel(n_layers)

    out_p = pl.pallas_call(
        kernel,
        out_shape=jax.ShapeDtypeStruct((batch_p, d_pad), out_dtype),
        grid=(num_batch_tiles,),
        in_specs=in_specs,
        out_specs=pl.BlockSpec((tile_b, d_pad), lambda i: (i, 0)),
        compiler_params=pltpu.CompilerParams(
            dimension_semantics=("parallel",),  # megacore-shardable batch axis
        ),
        cost_estimate=pl.CostEstimate(
            flops=flops, transcendentals=0, bytes_accessed=bytes_accessed
        ),
    )(*args)

    return out_p


def init_encoder_params(key, window_size, encoder_neurons, latent_dim):
    """Deterministic init mirroring nn.Linear's U(-1/sqrt(in), 1/sqrt(in)).

    Weights stored pre-transposed as (in_features, out_features) so y = x @ W + b.
    """
    dims_out = list(encoder_neurons) + [latent_dim]
    params = []
    in_features = window_size
    for h_dim in dims_out:
        key, kw, kb = jax.random.split(key, 3)
        bound = 1.0 / (in_features ** 0.5)
        w = jax.random.uniform(
            kw, (in_features, h_dim), minval=-bound, maxval=bound, dtype=jnp.float32
        )
        b = jax.random.uniform(
            kb, (1, h_dim), minval=-bound, maxval=bound, dtype=jnp.float32
        )
        params.append((w, b))
        in_features = h_dim
    return params


def encoder_reference_f32(x, params):
    """Pure f32 reference of the PyTorch eval-mode forward:
    per layer Linear -> ReLU -> Dropout(identity), including the latent layer."""
    h = x
    for w, b in params:
        h = jnp.maximum(jnp.dot(h, w) + b, 0.0)
    return h


def encoder_reference_bf16(x, params):
    """Reference matching the kernel's bf16-input / f32-accumulate numerics."""
    h = x
    for w, b in params:
        y = jnp.dot(
            h.astype(jnp.bfloat16),
            w.astype(jnp.bfloat16),
            preferred_element_type=jnp.float32,
        )
        h = jnp.maximum(y + b, 0.0)
    return h


if __name__ == "__main__":
    # AEConf-like settings (shapes consistent with the module).
    window_size = 32            # in_features of the first Linear
    encoder_neurons = [64, 32]
    latent_dim = 16
    batch = 256

    key = jax.random.PRNGKey(0)
    key, kx = jax.random.split(key)
    x = jax.random.normal(kx, (batch, window_size), dtype=jnp.float32)

    params = init_encoder_params(key, window_size, encoder_neurons, latent_dim)
    prep = prepare_encoder_params(params)

    out_padded = encoder_forward(x, prep)          # (batch_p, d_pad) bf16
    out_padded = jax.block_until_ready(out_padded)

    # Test-only slice of the valid region (callers should fuse this with the consumer).
    out = out_padded[:batch, :latent_dim].astype(jnp.float32)

    ref_bf16 = encoder_reference_bf16(x, params)   # same matmul numerics as kernel
    ref_f32 = encoder_reference_f32(x, params)     # true f32 module output

    assert out.shape == (batch, latent_dim), out.shape
    assert jnp.allclose(out, ref_bf16, atol=1e-2, rtol=1e-2), "mismatch vs bf16 reference"
    assert jnp.allclose(out, ref_f32, atol=4e-2, rtol=4e-2), "mismatch vs f32 reference"

    print("KERNEL_OK")
</pallas_src>

<mosaic_0001>
module attributes {stable_mosaic.version = 11 : i64} {
  func.func @kernel(%arg0: i32, %arg1: memref<256x32xf32, #tpu.memory_space<vmem>>, %arg2: memref<32x128xbf16, #tpu.memory_space<vmem>>, %arg3: memref<2x128x128xbf16, #tpu.memory_space<vmem>>, %arg4: memref<3x1x128xf32, #tpu.memory_space<vmem>>, %arg5: memref<256x128xbf16, #tpu.memory_space<vmem>>) attributes {dimension_semantics = [#tpu.dimension_semantics<parallel>], iteration_bounds = array<i64: 1>, scalar_prefetch = 0 : i64, scratch_operands = 0 : i64, tpu.core_type = #tpu.core_type<tc>, window_params = [{transform_indices = @transform_0, window_bounds = array<i64: 256, 32>}, {pipeline_mode = #tpu.pipeline_mode<synchronous>, transform_indices = @transform_1, window_bounds = array<i64: 32, 128>}, {pipeline_mode = #tpu.pipeline_mode<synchronous>, transform_indices = @transform_2, window_bounds = array<i64: 2, 128, 128>}, {pipeline_mode = #tpu.pipeline_mode<synchronous>, transform_indices = @transform_3, window_bounds = array<i64: 3, 1, 128>}, {transform_indices = @transform_4, window_bounds = array<i64: 256, 128>}]} {
    %c0 = arith.constant 0 : index
    %c0_0 = arith.constant 0 : index
    %0 = vector.load %arg1[%c0, %c0_0] : memref<256x32xf32, #tpu.memory_space<vmem>>, vector<256x32xf32>
    %1 = arith.truncf %0 : vector<256x32xf32> to vector<256x32xbf16>
    %c0_1 = arith.constant 0 : index
    %c0_2 = arith.constant 0 : index
    %2 = vector.load %arg2[%c0_1, %c0_2] : memref<32x128xbf16, #tpu.memory_space<vmem>>, vector<32x128xbf16>
    %cst = arith.constant dense<0.000000e+00> : vector<256x128xf32>
    %3 = tpu.matmul %1, %2, %cst {dimension_numbers = #tpu.dot_dimension_numbers<[1], [0], [0], [1], [0, 0, 1, 1], [], []>} : vector<256x32xbf16>, vector<32x128xbf16>, vector<256x128xf32> -> vector<256x128xf32>
    %c0_3 = arith.constant 0 : index
    %c0_4 = arith.constant 0 : index
    %c0_5 = arith.constant 0 : index
    %4 = vector.load %arg4[%c0_3, %c0_4, %c0_5] : memref<3x1x128xf32, #tpu.memory_space<vmem>>, vector<1x1x128xf32>
    %5 = vector.shape_cast %4 : vector<1x1x128xf32> to vector<1x128xf32>
    %6 = vector.broadcast %5 : vector<1x128xf32> to vector<256x128xf32>
    %7 = arith.addf %3, %6 : vector<256x128xf32>
    %cst_6 = arith.constant 0.000000e+00 : f32
    %8 = vector.broadcast %cst_6 : f32 to vector<256x128xf32>
    %9 = arith.maximumf %7, %8 : vector<256x128xf32>
    %10 = arith.truncf %9 : vector<256x128xf32> to vector<256x128xbf16>
    %c0_7 = arith.constant 0 : index
    %c0_8 = arith.constant 0 : index
    %c0_9 = arith.constant 0 : index
    %11 = vector.load %arg3[%c0_7, %c0_8, %c0_9] : memref<2x128x128xbf16, #tpu.memory_space<vmem>>, vector<1x128x128xbf16>
    %12 = vector.shape_cast %11 : vector<1x128x128xbf16> to vector<128x128xbf16>
    %cst_10 = arith.constant dense<0.000000e+00> : vector<256x128xf32>
    %13 = tpu.matmul %10, %12, %cst_10 {dimension_numbers = #tpu.dot_dimension_numbers<[1], [0], [0], [1], [0, 0, 1, 1], [], []>} : vector<256x128xbf16>, vector<128x128xbf16>, vector<256x128xf32> -> vector<256x128xf32>
    %c1 = arith.constant 1 : index
    %c0_11 = arith.constant 0 : index
    %c0_12 = arith.constant 0 : index
    %14 = vector.load %arg4[%c1, %c0_11, %c0_12] : memref<3x1x128xf32, #tpu.memory_space<vmem>>, vector<1x1x128xf32>
    %15 = vector.shape_cast %14 : vector<1x1x128xf32> to vector<1x128xf32>
    %16 = vector.broadcast %15 : vector<1x128xf32> to vector<256x128xf32>
    %17 = arith.addf %13, %16 : vector<256x128xf32>
    %cst_13 = arith.constant 0.000000e+00 : f32
    %18 = vector.broadcast %cst_13 : f32 to vector<256x128xf32>
    %19 = arith.maximumf %17, %18 : vector<256x128xf32>
    %20 = arith.truncf %19 : vector<256x128xf32> to vector<256x128xbf16>
    %c1_14 = arith.constant 1 : index
    %c0_15 = arith.constant 0 : index
    %c0_16 = arith.constant 0 : index
    %21 = vector.load %arg3[%c1_14, %c0_15, %c0_16] : memref<2x128x128xbf16, #tpu.memory_space<vmem>>, vector<1x128x128xbf16>
    %22 = vector.shape_cast %21 : vector<1x128x128xbf16> to vector<128x128xbf16>
    %cst_17 = arith.constant dense<0.000000e+00> : vector<256x128xf32>
    %23 = tpu.matmul %20, %22, %cst_17 {dimension_numbers = #tpu.dot_dimension_numbers<[1], [0], [0], [1], [0, 0, 1, 1], [], []>} : vector<256x128xbf16>, vector<128x128xbf16>, vector<256x128xf32> -> vector<256x128xf32>
    %c2 = arith.constant 2 : index
    %c0_18 = arith.constant 0 : index
    %c0_19 = arith.constant 0 : index
    %24 = vector.load %arg4[%c2, %c0_18, %c0_19] : memref<3x1x128xf32, #tpu.memory_space<vmem>>, vector<1x1x128xf32>
    %25 = vector.shape_cast %24 : vector<1x1x128xf32> to vector<1x128xf32>
    %26 = vector.broadcast %25 : vector<1x128xf32> to vector<256x128xf32>
    %27 = arith.addf %23, %26 : vector<256x128xf32>
    %cst_20 = arith.constant 0.000000e+00 : f32
    %28 = vector.broadcast %cst_20 : f32 to vector<256x128xf32>
    %29 = arith.maximumf %27, %28 : vector<256x128xf32>
    %30 = arith.truncf %29 : vector<256x128xf32> to vector<256x128xbf16>
    %c0_21 = arith.constant 0 : index
    %c0_22 = arith.constant 0 : index
    %31 = vector.load %arg5[%c0_21, %c0_22] : memref<256x128xbf16, #tpu.memory_space<vmem>>, vector<256x128xbf16>
    tpu.vector_store %arg5[%c0_21, %c0_22], %30 {strides = array<i32>} : memref<256x128xbf16, #tpu.memory_space<vmem>>, vector<256x128xbf16>,
    return
  }
  func.func @transform_0(%arg0: i32) -> (i32, i32) {
    %c0_i32 = arith.constant 0 : i32
    %c0_i32_0 = arith.constant 0 : i32
    return %arg0, %c0_i32 : i32, i32
  }
  func.func @transform_1(%arg0: i32) -> (i32, i32) {
    %c0_i32 = arith.constant 0 : i32
    %c0_i32_0 = arith.constant 0 : i32
    %c0_i32_1 = arith.constant 0 : i32
    return %c0_i32, %c0_i32_0 : i32, i32
  }
  func.func @transform_2(%arg0: i32) -> (i32, i32, i32) {
    %c0_i32 = arith.constant 0 : i32
    %c0_i32_0 = arith.constant 0 : i32
    %c0_i32_1 = arith.constant 0 : i32
    %c0_i32_2 = arith.constant 0 : i32
    return %c0_i32, %c0_i32_0, %c0_i32_1 : i32, i32, i32
  }
  func.func @transform_3(%arg0: i32) -> (i32, i32, i32) {
    %c0_i32 = arith.constant 0 : i32
    %c0_i32_0 = arith.constant 0 : i32
    %c0_i32_1 = arith.constant 0 : i32
    %c0_i32_2 = arith.constant 0 : i32
    return %c0_i32, %c0_i32_0, %c0_i32_1 : i32, i32, i32
  }
  func.func @transform_4(%arg0: i32) -> (i32, i32) {
    %c0_i32 = arith.constant 0 : i32
    %c0_i32_0 = arith.constant 0 : i32
    return %arg0, %c0_i32 : i32, i32
  }
}

</mosaic_0001>

<llo_original>
// kernel: tpu_custom_call.1
$region0: #{tpu_custom_call.1}
  #allocation0 [shape = 'u32[]', space=smem, size = 0x4, offset = 0x4, fixed_abs, tag = 'smem constant byte address 0x4 - core index']
  #allocation1 [shape = 'u32[144,128]{1,0:T(1,128)}', space=vmem, size = 0x12000, scoped, tag = 'internal scratch']
  %s0 = inlined_call_operand.vmem [shape: f32[256,32], index: 0, kind: input, shape index: {}]
  %s1 = inlined_call_operand.vmem [shape: bf16[32,128], index: 1, kind: input, shape index: {}]
  %s2 = inlined_call_operand.vmem [shape: bf16[2,128,128], index: 2, kind: input, shape index: {}]
  %s3 = inlined_call_operand.vmem [shape: f32[3,1,128], index: 3, kind: input, shape index: {}]
  %s4 = inlined_call_operand.hbm [shape: bf16[256,128], index: 4, kind: output, shape index: {}]
  %s5 = sld [smem:[#allocation0]]
  $region26: #{tpu_custom_call.1} parent=0
    _
  %s7 = ssub.s32 1, %s5
  %s8 = scalar_select 0, %s7, %s5
  $region1: #{tpu_custom_call.1} parent=0
    #allocation2 [shape = 'u8[65536]{0}', space=vmem, size = 0x10000, scoped, tag = 'output window, operand 0, single buffered']
    #allocation3 [shape = 's32[1]{0}', space=sflag, size = 0x4, scoped, tag = 'scoped memory for tpu_custom_call.1']
    %9 = vsyncpa [#allocation3], 0
    // Predicated region
    $region2: #{tpu_custom_call.1} parent=1 // pred_check
      _
    $region3: #{tpu_custom_call.1} parent=1 // pred_check_branch
      %11 = sbr.rel (0) target = $region5
    $region4: #{tpu_custom_call.1} parent=1 // pred_region
      _
    $region5: #{tpu_custom_call.1} parent=1 // pred_fallthru
      _
    // Predicated region
    $region6: #{tpu_custom_call.1} parent=1 // pred_check
      _
    $region7: #{tpu_custom_call.1} parent=1 // pred_check_branch
      %13 = sbr.rel (0) target = $region9
    $region8: #{tpu_custom_call.1} parent=1 // pred_region
      _
    $region9: #{tpu_custom_call.1} parent=1 // pred_fallthru
      _
    // Predicated region
    $region10: #{tpu_custom_call.1} parent=1 // pred_check
      _
    $region11: #{tpu_custom_call.1} parent=1 // pred_check_branch
      %15 = sbr.rel (0) target = $region13
    $region12: #{tpu_custom_call.1} parent=1 // pred_region
      _
    $region13: #{tpu_custom_call.1} parent=1 // pred_fallthru
      _
    // Predicated region
    $region14: #{tpu_custom_call.1} parent=1 // pred_check
      _
    $region15: #{tpu_custom_call.1} parent=1 // pred_check_branch
      %17 = sbr.rel (0) target = $region17
    $region16: #{tpu_custom_call.1} parent=1 // pred_region
      _
    $region17: #{tpu_custom_call.1} parent=1 // pred_fallthru
      _
    %v19 = vld [vmem:[%s0] sm:$0xff]
    %v20 = vld [vmem:[%s0 + $0x8] sm:$0xff]
    %v21 = vld [vmem:[%s0 + $0x10] sm:$0xff]
    %v22 = vld [vmem:[%s0 + $0x18] sm:$0xff]
    %v23 = vld [vmem:[%s0 + $0x20] sm:$0xff]
    %v24 = vld [vmem:[%s0 + $0x28] sm:$0xff]
    %v25 = vld [vmem:[%s0 + $0x30] sm:$0xff]
    %v26 = vld [vmem:[%s0 + $0x38] sm:$0xff]
    %v27 = vld [vmem:[%s0 + $0x40] sm:$0xff]
    %v28 = vld [vmem:[%s0 + $0x48] sm:$0xff]
    %v29 = vld [vmem:[%s0 + $0x50] sm:$0xff]
    %v30 = vld [vmem:[%s0 + $0x58] sm:$0xff]
    %v31 = vld [vmem:[%s0 + $0x60] sm:$0xff]
    %v32 = vld [vmem:[%s0 + $0x68] sm:$0xff]
    %v33 = vld [vmem:[%s0 + $0x70] sm:$0xff]
    %v34 = vld [vmem:[%s0 + $0x78] sm:$0xff]
    %v35 = vld [vmem:[%s0 + $0x80] sm:$0xff]
    %v36 = vld [vmem:[%s0 + $0x88] sm:$0xff]
    %v37 = vld [vmem:[%s0 + $0x90] sm:$0xff]
    %v38 = vld [vmem:[%s0 + $0x98] sm:$0xff]
    %v39 = vld [vmem:[%s0 + $0xa0] sm:$0xff]
    %v40 = vld [vmem:[%s0 + $0xa8] sm:$0xff]
    %v41 = vld [vmem:[%s0 + $0xb0] sm:$0xff]
    %v42 = vld [vmem:[%s0 + $0xb8] sm:$0xff]
    %v43 = vld [vmem:[%s0 + $0xc0] sm:$0xff]
    %v44 = vld [vmem:[%s0 + $0xc8] sm:$0xff]
    %v45 = vld [vmem:[%s0 + $0xd0] sm:$0xff]
    %v46 = vld [vmem:[%s0 + $0xd8] sm:$0xff]
    %v47 = vld [vmem:[%s0 + $0xe0] sm:$0xff]
    %v48 = vld [vmem:[%s0 + $0xe8] sm:$0xff]
    %v49 = vld [vmem:[%s0 + $0xf0] sm:$0xff]
    %v50 = vld [vmem:[%s0 + $0xf8] sm:$0xff]
    %v51 = vpack.c.bf16 %v20, %v19
    %v52 = vpack.c.bf16 %v22, %v21
    %v53 = vpack.c.bf16 %v24, %v23
    %v54 = vpack.c.bf16 %v26, %v25
    %v55 = vpack.c.bf16 %v28, %v27
    %v56 = vpack.c.bf16 %v30, %v29
    %v57 = vpack.c.bf16 %v32, %v31
    %v58 = vpack.c.bf16 %v34, %v33
    %v59 = vpack.c.bf16 %v36, %v35
    %v60 = vpack.c.bf16 %v38, %v37
    %v61 = vpack.c.bf16 %v40, %v39
    %v62 = vpack.c.bf16 %v42, %v41
    %v63 = vpack.c.bf16 %v44, %v43
    %v64 = vpack.c.bf16 %v46, %v45
    %v65 = vpack.c.bf16 %v48, %v47
    %v66 = vpack.c.bf16 %v50, %v49
    %v67 = vld [vmem:[%s1] sm:$0xf]
    %v68 = vld [vmem:[%s1 + $0x4] sm:$0xf]
    %v69 = vld [vmem:[%s1 + $0x8] sm:$0xf]
    %v70 = vld [vmem:[%s1 + $0xc] sm:$0xf]
    %v71 = vld [vmem:[%s3] sm:$0x1]
    %v73 = vlaneseq
    %v74 = vshrl.u32 %v73, 7
    %v75 = vsub.s32 0, %v74
    %v76 = vrot.slane %v71, %v75
    %v82 = vunpack.c.l.b16 %v67
    %v83 = vunpack.c.l.b16 %v68
    %v84 = vunpack.c.l.b16 %v69
    %v85 = vunpack.c.l.b16 %v70
    %v86 = vpack.c.b16 %v83, %v82
    %v87 = vpack.c.b16 %v85, %v84
    %vm90 = vcmask 261120
    %v92 = vsel %vm90, %v51, 0
    %v95 = vsel %vm90, %v52, 0
    %v98 = vsel %vm90, %v53, 0
    %v101 = vsel %vm90, %v54, 0
    %v104 = vsel %vm90, %v55, 0
    %v107 = vsel %vm90, %v56, 0
    %v110 = vsel %vm90, %v57, 0
    %v113 = vsel %vm90, %v58, 0
    %v116 = vsel %vm90, %v59, 0
    %v119 = vsel %vm90, %v60, 0
    %v122 = vsel %vm90, %v61, 0
    %v125 = vsel %vm90, %v62, 0
    %v128 = vsel %vm90, %v63, 0
    %v131 = vsel %vm90, %v64, 0
    %v134 = vsel %vm90, %v65, 0
    %v137 = vsel %vm90, %v66, 0
    %139 = vmatprep.subr.bf16.mxu0 0
    %140 = vmatpush1.bf16.msra.mxu0 0
    %141 = vmatprep.subr.bf16.mxu0 0
    %142 = vmatpush1.bf16.msra.mxu0 0
    %143 = vmatprep.subr.bf16.mxu0 0
    %144 = vmatpush1.bf16.msra.mxu0 0
    %145 = vmatprep.subr.bf16.mxu0 0
    %146 = vmatpush1.bf16.msra.mxu0 0
    %147 = vmatprep.subr.bf16.mxu0 0
    %148 = vmatpush1.bf16.msra.mxu0 0
    %149 = vmatprep.subr.bf16.mxu0 0
    %150 = vmatpush1.bf16.msra.mxu0 0
    %151 = vmatprep.subr.bf16.mxu0 0
    %152 = vmatpush1.bf16.msra.mxu0 %v87
    %153 = vmatprep.subr.bf16.mxu0 0
    %154 = vmatpush1.bf16.msra.mxu0 %v86
    %155 = vmatprep.subr.bf16.mxu0 0
    %156 = vmatpush2.bf16.msra.mxu0 0
    %157 = vmatprep.subr.bf16.mxu0 0
    %158 = vmatpush2.bf16.msra.mxu0 0
    %159 = vmatprep.subr.bf16.mxu0 0
    %160 = vmatpush2.bf16.msra.mxu0 0
    %161 = vmatprep.subr.bf16.mxu0 0
    %162 = vmatpush2.bf16.msra.mxu0 0
    %163 = vmatprep.subr.bf16.mxu0 0
    %164 = vmatpush2.bf16.msra.mxu0 0
    %165 = vmatprep.subr.bf16.mxu0 0
    %166 = vmatpush2.bf16.msra.mxu0 0
    %167 = vmatprep.subr.bf16.mxu0 0
    %168 = vmatpush2.bf16.msra.mxu0 0
    %169 = vmatprep.subr.bf16.mxu0 0
    %170 = vmatpush2.bf16.msra.mxu0 0
    %171 = vmatprep.mubr.bf16.mxu0 0
    %172 = vmatmul.mubr.bf16.gmra.mxu0 %v92
    %v173 = vpop.f32.mrf.mxu0
    %v174 = vadd.f32 %v76, %v173
    %v175 = vpop.f32.mrf.mxu0
    %v176 = vpop.f32.mrf.mxu0
    %v177 = vadd.f32 %v76, %v176
    %v178 = vpop.f32.mrf.mxu0
    %179 = vmatprep.mubr.bf16.mxu0 0
    %180 = vmatmul.mubr.bf16.gmra.mxu0 %v95
    %v181 = vpop.f32.mrf.mxu0
    %v182 = vadd.f32 %v76, %v181
    %v183 = vpop.f32.mrf.mxu0
    %v184 = vpop.f32.mrf.mxu0
    %v185 = vadd.f32 %v76, %v184
    %v186 = vpop.f32.mrf.mxu0
    %187 = vmatprep.mubr.bf16.mxu0 0
    %188 = vmatmul.mubr.bf16.gmra.mxu0 %v98
    %v189 = vpop.f32.mrf.mxu0
    %v190 = vadd.f32 %v76, %v189
    %v191 = vpop.f32.mrf.mxu0
    %v192 = vpop.f32.mrf.mxu0
    %v193 = vadd.f32 %v76, %v192
    %v194 = vpop.f32.mrf.mxu0
    %195 = vmatprep.mubr.bf16.mxu0 0
    %196 = vmatmul.mubr.bf16.gmra.mxu0 %v101
    %v197 = vpop.f32.mrf.mxu0
    %v198 = vadd.f32 %v76, %v197
    %v199 = vpop.f32.mrf.mxu0
    %v200 = vpop.f32.mrf.mxu0
    %v201 = vadd.f32 %v76, %v200
    %v202 = vpop.f32.mrf.mxu0
    %203 = vmatprep.mubr.bf16.mxu0 0
    %204 = vmatmul.mubr.bf16.gmra.mxu0 %v104
    %v205 = vpop.f32.mrf.mxu0
    %v206 = vadd.f32 %v76, %v205
    %v207 = vpop.f32.mrf.mxu0
    %v208 = vpop.f32.mrf.mxu0
    %v209 = vadd.f32 %v76, %v208
    %v210 = vpop.f32.mrf.mxu0
    %211 = vmatprep.mubr.bf16.mxu0 0
    %212 = vmatmul.mubr.bf16.gmra.mxu0 %v107
    %v213 = vpop.f32.mrf.mxu0
    %v214 = vadd.f32 %v76, %v213
    %v215 = vpop.f32.mrf.mxu0
    %v216 = vpop.f32.mrf.mxu0
    %v217 = vadd.f32 %v76, %v216
    %v218 = vpop.f32.mrf.mxu0
    %219 = vmatprep.mubr.bf16.mxu0 0
    %220 = vmatmul.mubr.bf16.gmra.mxu0 %v110
    %v221 = vpop.f32.mrf.mxu0
    %v222 = vadd.f32 %v76, %v221
    %v223 = vpop.f32.mrf.mxu0
    %v224 = vpop.f32.mrf.mxu0
    %v225 = vadd.f32 %v76, %v224
    %v226 = vpop.f32.mrf.mxu0
    %227 = vmatprep.mubr.bf16.mxu0 0
    %228 = vmatmul.mubr.bf16.gmra.mxu0 %v113
    %v229 = vpop.f32.mrf.mxu0
    %v230 = vadd.f32 %v76, %v229
    %v231 = vpop.f32.mrf.mxu0
    %v232 = vpop.f32.mrf.mxu0
    %v233 = vadd.f32 %v76, %v232
    %v234 = vpop.f32.mrf.mxu0
    %235 = vmatprep.mubr.bf16.mxu0 0
    %236 = vmatmul.mubr.bf16.gmra.mxu0 %v116
    %v237 = vpop.f32.mrf.mxu0
    %v238 = vadd.f32 %v76, %v237
    %v239 = vpop.f32.mrf.mxu0
    %v240 = vpop.f32.mrf.mxu0
    %v241 = vadd.f32 %v76, %v240
    %v242 = vpop.f32.mrf.mxu0
    %243 = vmatprep.mubr.bf16.mxu0 0
    %244 = vmatmul.mubr.bf16.gmra.mxu0 %v119
    %v245 = vpop.f32.mrf.mxu0
    %v246 = vadd.f32 %v76, %v245
    %v247 = vpop.f32.mrf.mxu0
    %v248 = vpop.f32.mrf.mxu0
    %v249 = vadd.f32 %v76, %v248
    %v250 = vpop.f32.mrf.mxu0
    %251 = vmatprep.mubr.bf16.mxu0 0
    %252 = vmatmul.mubr.bf16.gmra.mxu0 %v122
    %v253 = vpop.f32.mrf.mxu0
    %v254 = vadd.f32 %v76, %v253
    %v255 = vpop.f32.mrf.mxu0
    %v256 = vpop.f32.mrf.mxu0
    %v257 = vadd.f32 %v76, %v256
    %v258 = vpop.f32.mrf.mxu0
    %259 = vmatprep.mubr.bf16.mxu0 0
    %260 = vmatmul.mubr.bf16.gmra.mxu0 %v125
    %v261 = vpop.f32.mrf.mxu0
    %v262 = vadd.f32 %v76, %v261
    %v263 = vpop.f32.mrf.mxu0
    %v264 = vpop.f32.mrf.mxu0
    %v265 = vadd.f32 %v76, %v264
    %v266 = vpop.f32.mrf.mxu0
    %267 = vmatprep.mubr.bf16.mxu0 0
    %268 = vmatmul.mubr.bf16.gmra.mxu0 %v128
    %v269 = vpop.f32.mrf.mxu0
    %v270 = vadd.f32 %v76, %v269
    %v271 = vpop.f32.mrf.mxu0
    %v272 = vpop.f32.mrf.mxu0
    %v273 = vadd.f32 %v76, %v272
    %v274 = vpop.f32.mrf.mxu0
    %275 = vmatprep.mubr.bf16.mxu0 0
    %276 = vmatmul.mubr.bf16.gmra.mxu0 %v131
    %v277 = vpop.f32.mrf.mxu0
    %v278 = vadd.f32 %v76, %v277
    %v279 = vpop.f32.mrf.mxu0
    %v280 = vpop.f32.mrf.mxu0
    %v281 = vadd.f32 %v76, %v280
    %v282 = vpop.f32.mrf.mxu0
    %283 = vmatprep.mubr.bf16.mxu0 0
    %284 = vmatmul.mubr.bf16.gmra.mxu0 %v134
    %v285 = vpop.f32.mrf.mxu0
    %v286 = vadd.f32 %v76, %v285
    %v287 = vpop.f32.mrf.mxu0
    %v288 = vpop.f32.mrf.mxu0
    %v289 = vadd.f32 %v76, %v288
    %v290 = vpop.f32.mrf.mxu0
    %291 = vmatprep.mubr.bf16.mxu0 0
    %292 = vmatmul.mubr.bf16.gmra.mxu0 %v137
    %v293 = vpop.f32.mrf.mxu0
    %v294 = vadd.f32 %v76, %v293
    %v295 = vpop.f32.mrf.mxu0
    %v296 = vpop.f32.mrf.mxu0
    %v297 = vadd.f32 %v76, %v296
    %v298 = vpop.f32.mrf.mxu0
    %299 = vdwg.mxu0
    %v300 = vmax.f32 %v174, 0.0
    %v301 = vmax.f32 %v177, 0.0
    %v302 = vmax.f32 %v182, 0.0
    %v303 = vmax.f32 %v185, 0.0
    %v304 = vmax.f32 %v190, 0.0
    %v305 = vmax.f32 %v193, 0.0
    %v306 = vmax.f32 %v198, 0.0
    %v307 = vmax.f32 %v201, 0.0
    %v308 = vmax.f32 %v206, 0.0
    %v309 = vmax.f32 %v209, 0.0
    %v310 = vmax.f32 %v214, 0.0
    %v311 = vmax.f32 %v217, 0.0
    %v312 = vmax.f32 %v222, 0.0
    %v313 = vmax.f32 %v225, 0.0
    %v314 = vmax.f32 %v230, 0.0
    %v315 = vmax.f32 %v233, 0.0
    %v316 = vmax.f32 %v238, 0.0
    %v317 = vmax.f32 %v241, 0.0
    %v318 = vmax.f32 %v246, 0.0
    %v319 = vmax.f32 %v249, 0.0
    %v320 = vmax.f32 %v254, 0.0
    %v321 = vmax.f32 %v257, 0.0
    %v322 = vmax.f32 %v262, 0.0
    %v323 = vmax.f32 %v265, 0.0
    %v324 = vmax.f32 %v270, 0.0
    %v325 = vmax.f32 %v273, 0.0
    %v326 = vmax.f32 %v278, 0.0
    %v327 = vmax.f32 %v281, 0.0
    %v328 = vmax.f32 %v286, 0.0
    %v329 = vmax.f32 %v289, 0.0
    %v330 = vmax.f32 %v294, 0.0
    %v331 = vmax.f32 %v297, 0.0
    %v332 = vpack.c.bf16 %v301, %v300
    %v333 = vpack.c.bf16 %v303, %v302
    %v334 = vpack.c.bf16 %v305, %v304
    %v335 = vpack.c.bf16 %v307, %v306
    %v336 = vpack.c.bf16 %v309, %v308
    %v337 = vpack.c.bf16 %v311, %v310
    %v338 = vpack.c.bf16 %v313, %v312
    %v339 = vpack.c.bf16 %v315, %v314
    %v340 = vpack.c.bf16 %v317, %v316
    %v341 = vpack.c.bf16 %v319, %v318
    %v342 = vpack.c.bf16 %v321, %v320
    %v343 = vpack.c.bf16 %v323, %v322
    %v344 = vpack.c.bf16 %v325, %v324
    %v345 = vpack.c.bf16 %v327, %v326
    %v346 = vpack.c.bf16 %v329, %v328
    %v347 = vpack.c.bf16 %v331, %v330
    %v348 = vld [vmem:[%s2] sm:$0xf]
    %v349 = vld [vmem:[%s2 + $0x4] sm:$0xf]
    %v350 = vld [vmem:[%s2 + $0x8] sm:$0xf]
    %v351 = vld [vmem:[%s2 + $0xc] sm:$0xf]
    %v352 = vld [vmem:[%s2 + $0x10] sm:$0xf]
    %v353 = vld [vmem:[%s2 + $0x14] sm:$0xf]
    %v354 = vld [vmem:[%s2 + $0x18] sm:$0xf]
    %v355 = vld [vmem:[%s2 + $0x1c] sm:$0xf]
    %v356 = vld [vmem:[%s2 + $0x20] sm:$0xf]
    %v357 = vld [vmem:[%s2 + $0x24] sm:$0xf]
    %v358 = vld [vmem:[%s2 + $0x28] sm:$0xf]
    %v359 = vld [vmem:[%s2 + $0x2c] sm:$0xf]
    %v360 = vld [vmem:[%s2 + $0x30] sm:$0xf]
    %v361 = vld [vmem:[%s2 + $0x34] sm:$0xf]
    %v362 = vld [vmem:[%s2 + $0x38] sm:$0xf]
    %v363 = vld [vmem:[%s2 + $0x3c] sm:$0xf]
    %s364 = scalar_lea.vmem %s3, 1
    %v365 = vld [vmem:[%s364] sm:$0x1]
    %v367 = vlaneseq
    %v368 = vshrl.u32 %v367, 7
    %v369 = vsub.s32 0, %v368
    %v370 = vrot.slane %v365, %v369
    %v388 = vunpack.c.l.b16 %v348
    %v389 = vunpack.c.l.b16 %v349
    %v390 = vunpack.c.l.b16 %v350
    %v391 = vunpack.c.l.b16 %v351
    %v392 = vunpack.c.l.b16 %v352
    %v393 = vunpack.c.l.b16 %v353
    %v394 = vunpack.c.l.b16 %v354
    %v395 = vunpack.c.l.b16 %v355
    %v396 = vunpack.c.l.b16 %v356
    %v397 = vunpack.c.l.b16 %v357
    %v398 = vunpack.c.l.b16 %v358
    %v399 = vunpack.c.l.b16 %v359
    %v400 = vunpack.c.l.b16 %v360
    %v401 = vunpack.c.l.b16 %v361
    %v402 = vunpack.c.l.b16 %v362
    %v403 = vunpack.c.l.b16 %v363
    %v404 = vpack.c.b16 %v389, %v388
    %v405 = vpack.c.b16 %v391, %v390
    %v406 = vpack.c.b16 %v393, %v392
    %v407 = vpack.c.b16 %v395, %v394
    %v408 = vpack.c.b16 %v397, %v396
    %v409 = vpack.c.b16 %v399, %v398
    %v410 = vpack.c.b16 %v401, %v400
    %v411 = vpack.c.b16 %v403, %v402
    %420 = vmatprep.subr.bf16.mxu0 0
    %421 = vmatpush1.bf16.msra.mxu0 %v411
    %422 = vmatprep.subr.bf16.mxu0 0
    %423 = vmatpush1.bf16.msra.mxu0 %v410
    %424 = vmatprep.subr.bf16.mxu0 0
    %425 = vmatpush1.bf16.msra.mxu0 %v409
    %426 = vmatprep.subr.bf16.mxu0 0
    %427 = vmatpush1.bf16.msra.mxu0 %v408
    %428 = vmatprep.subr.bf16.mxu0 0
    %429 = vmatpush1.bf16.msra.mxu0 %v407
    %430 = vmatprep.subr.bf16.mxu0 0
    %431 = vmatpush1.bf16.msra.mxu0 %v406
    %432 = vmatprep.subr.bf16.mxu0 0
    %433 = vmatpush1.bf16.msra.mxu0 %v405
    %434 = vmatprep.subr.bf16.mxu0 0
    %435 = vmatpush1.bf16.msra.mxu0 %v404
    %436 = vmatprep.subr.bf16.mxu0 0
    %437 = vmatpush2.bf16.msra.mxu0 0
    %438 = vmatprep.subr.bf16.mxu0 0
    %439 = vmatpush2.bf16.msra.mxu0 0
    %440 = vmatprep.subr.bf16.mxu0 0
    %441 = vmatpush2.bf16.msra.mxu0 0
    %442 = vmatprep.subr.bf16.mxu0 0
    %443 = vmatpush2.bf16.msra.mxu0 0
    %444 = vmatprep.subr.bf16.mxu0 0
    %445 = vmatpush2.bf16.msra.mxu0 0
    %446 = vmatprep.subr.bf16.mxu0 0
    %447 = vmatpush2.bf16.msra.mxu0 0
    %448 = vmatprep.subr.bf16.mxu0 0
    %449 = vmatpush2.bf16.msra.mxu0 0
    %450 = vmatprep.subr.bf16.mxu0 0
    %451 = vmatpush2.bf16.msra.mxu0 0
    %452 = vmatprep.mubr.bf16.mxu0 0
    %453 = vmatmul.mubr.bf16.gmra.mxu0 %v332
    %v454 = vpop.f32.mrf.mxu0
    %v455 = vadd.f32 %v370, %v454
    %v456 = vpop.f32.mrf.mxu0
    %v457 = vpop.f32.mrf.mxu0
    %v458 = vadd.f32 %v370, %v457
    %v459 = vpop.f32.mrf.mxu0
    %460 = vmatprep.mubr.bf16.mxu0 0
    %461 = vmatmul.mubr.bf16.gmra.mxu0 %v333
    %v462 = vpop.f32.mrf.mxu0
    %v463 = vadd.f32 %v370, %v462
    %v464 = vpop.f32.mrf.mxu0
    %v465 = vpop.f32.mrf.mxu0
    %v466 = vadd.f32 %v370, %v465
    %v467 = vpop.f32.mrf.mxu0
    %468 = vmatprep.mubr.bf16.mxu0 0
    %469 = vmatmul.mubr.bf16.gmra.mxu0 %v334
    %v470 = vpop.f32.mrf.mxu0
    %v471 = vadd.f32 %v370, %v470
    %v472 = vpop.f32.mrf.mxu0
    %v473 = vpop.f32.mrf.mxu0
    %v474 = vadd.f32 %v370, %v473
    %v475 = vpop.f32.mrf.mxu0
    %476 = vmatprep.mubr.bf16.mxu0 0
    %477 = vmatmul.mubr.bf16.gmra.mxu0 %v335
    %v478 = vpop.f32.mrf.mxu0
    %v479 = vadd.f32 %v370, %v478
    %v480 = vpop.f32.mrf.mxu0
    %v481 = vpop.f32.mrf.mxu0
    %v482 = vadd.f32 %v370, %v481
    %v483 = vpop.f32.mrf.mxu0
    %484 = vmatprep.mubr.bf16.mxu0 0
    %485 = vmatmul.mubr.bf16.gmra.mxu0 %v336
    %v486 = vpop.f32.mrf.mxu0
    %v487 = vadd.f32 %v370, %v486
    %v488 = vpop.f32.mrf.mxu0
    %v489 = vpop.f32.mrf.mxu0
    %v490 = vadd.f32 %v370, %v489
    %v491 = vpop.f32.mrf.mxu0
    %492 = vmatprep.mubr.bf16.mxu0 0
    %493 = vmatmul.mubr.bf16.gmra.mxu0 %v337
    %v494 = vpop.f32.mrf.mxu0
    %v495 = vadd.f32 %v370, %v494
    %v496 = vpop.f32.mrf.mxu0
    %v497 = vpop.f32.mrf.mxu0
    %v498 = vadd.f32 %v370, %v497
    %v499 = vpop.f32.mrf.mxu0
    %500 = vmatprep.mubr.bf16.mxu0 0
    %501 = vmatmul.mubr.bf16.gmra.mxu0 %v338
    %v502 = vpop.f32.mrf.mxu0
    %v503 = vadd.f32 %v370, %v502
    %v504 = vpop.f32.mrf.mxu0
    %v505 = vpop.f32.mrf.mxu0
    %v506 = vadd.f32 %v370, %v505
    %v507 = vpop.f32.mrf.mxu0
    %508 = vmatprep.mubr.bf16.mxu0 0
    %509 = vmatmul.mubr.bf16.gmra.mxu0 %v339
    %v510 = vpop.f32.mrf.mxu0
    %v511 = vadd.f32 %v370, %v510
    %v512 = vpop.f32.mrf.mxu0
    %v513 = vpop.f32.mrf.mxu0
    %v514 = vadd.f32 %v370, %v513
    %v515 = vpop.f32.mrf.mxu0
    %516 = vmatprep.mubr.bf16.mxu0 0
    %517 = vmatmul.mubr.bf16.gmra.mxu0 %v340
    %v518 = vpop.f32.mrf.mxu0
    %v519 = vadd.f32 %v370, %v518
    %v520 = vpop.f32.mrf.mxu0
    %v521 = vpop.f32.mrf.mxu0
    %v522 = vadd.f32 %v370, %v521
    %v523 = vpop.f32.mrf.mxu0
    %524 = vmatprep.mubr.bf16.mxu0 0
    %525 = vmatmul.mubr.bf16.gmra.mxu0 %v341
    %v526 = vpop.f32.mrf.mxu0
    %v527 = vadd.f32 %v370, %v526
    %v528 = vpop.f32.mrf.mxu0
    %v529 = vpop.f32.mrf.mxu0
    %v530 = vadd.f32 %v370, %v529
    %v531 = vpop.f32.mrf.mxu0
    %532 = vmatprep.mubr.bf16.mxu0 0
    %533 = vmatmul.mubr.bf16.gmra.mxu0 %v342
    %v534 = vpop.f32.mrf.mxu0
    %v535 = vadd.f32 %v370, %v534
    %v536 = vpop.f32.mrf.mxu0
    %v537 = vpop.f32.mrf.mxu0
    %v538 = vadd.f32 %v370, %v537
    %v539 = vpop.f32.mrf.mxu0
    %540 = vmatprep.mubr.bf16.mxu0 0
    %541 = vmatmul.mubr.bf16.gmra.mxu0 %v343
    %v542 = vpop.f32.mrf.mxu0
    %v543 = vadd.f32 %v370, %v542
    %v544 = vpop.f32.mrf.mxu0
    %v545 = vpop.f32.mrf.mxu0
    %v546 = vadd.f32 %v370, %v545
    %v547 = vpop.f32.mrf.mxu0
    %548 = vmatprep.mubr.bf16.mxu0 0
    %549 = vmatmul.mubr.bf16.gmra.mxu0 %v344
    %v550 = vpop.f32.mrf.mxu0
    %v551 = vadd.f32 %v370, %v550
    %v552 = vpop.f32.mrf.mxu0
    %v553 = vpop.f32.mrf.mxu0
    %v554 = vadd.f32 %v370, %v553
    %v555 = vpop.f32.mrf.mxu0
    %556 = vmatprep.mubr.bf16.mxu0 0
    %557 = vmatmul.mubr.bf16.gmra.mxu0 %v345
    %v558 = vpop.f32.mrf.mxu0
    %v559 = vadd.f32 %v370, %v558
    %v560 = vpop.f32.mrf.mxu0
    %v561 = vpop.f32.mrf.mxu0
    %v562 = vadd.f32 %v370, %v561
    %v563 = vpop.f32.mrf.mxu0
    %564 = vmatprep.mubr.bf16.mxu0 0
    %565 = vmatmul.mubr.bf16.gmra.mxu0 %v346
    %v566 = vpop.f32.mrf.mxu0
    %v567 = vadd.f32 %v370, %v566
    %v568 = vpop.f32.mrf.mxu0
    %v569 = vpop.f32.mrf.mxu0
    %v570 = vadd.f32 %v370, %v569
    %v571 = vpop.f32.mrf.mxu0
    %572 = vmatprep.mubr.bf16.mxu0 0
    %573 = vmatmul.mubr.bf16.gmra.mxu0 %v347
    %v574 = vpop.f32.mrf.mxu0
    %v575 = vadd.f32 %v370, %v574
    %v576 = vpop.f32.mrf.mxu0
    %v577 = vpop.f32.mrf.mxu0
    %v578 = vadd.f32 %v370, %v577
    %v579 = vpop.f32.mrf.mxu0
    %580 = vdwg.mxu0
    %v581 = vmax.f32 %v455, 0.0
    %v582 = vmax.f32 %v458, 0.0
    %v583 = vmax.f32 %v463, 0.0
    %v584 = vmax.f32 %v466, 0.0
    %v585 = vmax.f32 %v471, 0.0
    %v586 = vmax.f32 %v474, 0.0
    %v587 = vmax.f32 %v479, 0.0
    %v588 = vmax.f32 %v482, 0.0
    %v589 = vmax.f32 %v487, 0.0
    %v590 = vmax.f32 %v490, 0.0
    %v591 = vmax.f32 %v495, 0.0
    %v592 = vmax.f32 %v498, 0.0
    %v593 = vmax.f32 %v503, 0.0
    %v594 = vmax.f32 %v506, 0.0
    %v595 = vmax.f32 %v511, 0.0
    %v596 = vmax.f32 %v514, 0.0
    %v597 = vmax.f32 %v519, 0.0
    %v598 = vmax.f32 %v522, 0.0
    %v599 = vmax.f32 %v527, 0.0
    %v600 = vmax.f32 %v530, 0.0
    %v601 = vmax.f32 %v535, 0.0
    %v602 = vmax.f32 %v538, 0.0
    %v603 = vmax.f32 %v543, 0.0
    %v604 = vmax.f32 %v546, 0.0
    %v605 = vmax.f32 %v551, 0.0
    %v606 = vmax.f32 %v554, 0.0
    %v607 = vmax.f32 %v559, 0.0
    %v608 = vmax.f32 %v562, 0.0
    %v609 = vmax.f32 %v567, 0.0
    %v610 = vmax.f32 %v570, 0.0
    %v611 = vmax.f32 %v575, 0.0
    %v612 = vmax.f32 %v578, 0.0
    %v613 = vpack.c.bf16 %v582, %v581
    %v614 = vpack.c.bf16 %v584, %v583
    %v615 = vpack.c.bf16 %v586, %v585
    %v616 = vpack.c.bf16 %v588, %v587
    %v617 = vpack.c.bf16 %v590, %v589
    %v618 = vpack.c.bf16 %v592, %v591
    %v619 = vpack.c.bf16 %v594, %v593
    %v620 = vpack.c.bf16 %v596, %v595
    %v621 = vpack.c.bf16 %v598, %v597
    %v622 = vpack.c.bf16 %v600, %v599
    %v623 = vpack.c.bf16 %v602, %v601
    %v624 = vpack.c.bf16 %v604, %v603
    %v625 = vpack.c.bf16 %v606, %v605
    %v626 = vpack.c.bf16 %v608, %v607
    %v627 = vpack.c.bf16 %v610, %v609
    %v628 = vpack.c.bf16 %v612, %v611
    %s629 = scalar_lea.vmem %s2, 64
    %v630 = vld [vmem:[%s629] sm:$0xf]
    %v631 = vld [vmem:[%s629 + $0x4] sm:$0xf]
    %v632 = vld [vmem:[%s629 + $0x8] sm:$0xf]
    %v633 = vld [vmem:[%s629 + $0xc] sm:$0xf]
    %v634 = vld [vmem:[%s629 + $0x10] sm:$0xf]
    %v635 = vld [vmem:[%s629 + $0x14] sm:$0xf]
    %v636 = vld [vmem:[%s629 + $0x18] sm:$0xf]
    %v637 = vld [vmem:[%s629 + $0x1c] sm:$0xf]
    %v638 = vld [vmem:[%s629 + $0x20] sm:$0xf]
    %v639 = vld [vmem:[%s629 + $0x24] sm:$0xf]
    %v640 = vld [vmem:[%s629 + $0x28] sm:$0xf]
    %v641 = vld [vmem:[%s629 + $0x2c] sm:$0xf]
    %v642 = vld [vmem:[%s629 + $0x30] sm:$0xf]
    %v643 = vld [vmem:[%s629 + $0x34] sm:$0xf]
    %v644 = vld [vmem:[%s629 + $0x38] sm:$0xf]
    %v645 = vld [vmem:[%s629 + $0x3c] sm:$0xf]
    %s646 = scalar_lea.vmem %s3, 2
    %v647 = vld [vmem:[%s646] sm:$0x1]
    %v649 = vlaneseq
    %v650 = vshrl.u32 %v649, 7
    %v651 = vsub.s32 0, %v650
    %v652 = vrot.slane %v647, %v651
    %v670 = vunpack.c.l.b16 %v630
    %v671 = vunpack.c.l.b16 %v631
    %v672 = vunpack.c.l.b16 %v632
    %v673 = vunpack.c.l.b16 %v633
    %v674 = vunpack.c.l.b16 %v634
    %v675 = vunpack.c.l.b16 %v635
    %v676 = vunpack.c.l.b16 %v636
    %v677 = vunpack.c.l.b16 %v637
    %v678 = vunpack.c.l.b16 %v638
    %v679 = vunpack.c.l.b16 %v639
    %v680 = vunpack.c.l.b16 %v640
    %v681 = vunpack.c.l.b16 %v641
    %v682 = vunpack.c.l.b16 %v642
    %v683 = vunpack.c.l.b16 %v643
    %v684 = vunpack.c.l.b16 %v644
    %v685 = vunpack.c.l.b16 %v645
    %v686 = vpack.c.b16 %v671, %v670
    %v687 = vpack.c.b16 %v673, %v672
    %v688 = vpack.c.b16 %v675, %v674
    %v689 = vpack.c.b16 %v677, %v676
    %v690 = vpack.c.b16 %v679, %v678
    %v691 = vpack.c.b16 %v681, %v680
    %v692 = vpack.c.b16 %v683, %v682
    %v693 = vpack.c.b16 %v685, %v684
    %702 = vmatprep.subr.bf16.mxu0 0
    %703 = vmatpush1.bf16.msra.mxu0 %v693
    %704 = vmatprep.subr.bf16.mxu0 0
    %705 = vmatpush1.bf16.msra.mxu0 %v692
    %706 = vmatprep.subr.bf16.mxu0 0
    %707 = vmatpush1.bf16.msra.mxu0 %v691
    %708 = vmatprep.subr.bf16.mxu0 0
    %709 = vmatpush1.bf16.msra.mxu0 %v690
    %710 = vmatprep.subr.bf16.mxu0 0
    %711 = vmatpush1.bf16.msra.mxu0 %v689
    %712 = vmatprep.subr.bf16.mxu0 0
    %713 = vmatpush1.bf16.msra.mxu0 %v688
    %714 = vmatprep.subr.bf16.mxu0 0
    %715 = vmatpush1.bf16.msra.mxu0 %v687
    %716 = vmatprep.subr.bf16.mxu0 0
    %717 = vmatpush1.bf16.msra.mxu0 %v686
    %718 = vmatprep.subr.bf16.mxu0 0
    %719 = vmatpush2.bf16.msra.mxu0 0
    %720 = vmatprep.subr.bf16.mxu0 0
    %721 = vmatpush2.bf16.msra.mxu0 0
    %722 = vmatprep.subr.bf16.mxu0 0
    %723 = vmatpush2.bf16.msra.mxu0 0
    %724 = vmatprep.subr.bf16.mxu0 0
    %725 = vmatpush2.bf16.msra.mxu0 0
    %726 = vmatprep.subr.bf16.mxu0 0
    %727 = vmatpush2.bf16.msra.mxu0 0
    %728 = vmatprep.subr.bf16.mxu0 0
    %729 = vmatpush2.bf16.msra.mxu0 0
    %730 = vmatprep.subr.bf16.mxu0 0
    %731 = vmatpush2.bf16.msra.mxu0 0
    %732 = vmatprep.subr.bf16.mxu0 0
    %733 = vmatpush2.bf16.msra.mxu0 0
    %734 = vmatprep.mubr.bf16.mxu0 0
    %735 = vmatmul.mubr.bf16.gmra.mxu0 %v613
    %v736 = vpop.f32.mrf.mxu0
    %v737 = vadd.f32 %v652, %v736
    %v738 = vpop.f32.mrf.mxu0
    %v739 = vpop.f32.mrf.mxu0
    %v740 = vadd.f32 %v652, %v739
    %v741 = vpop.f32.mrf.mxu0
    %742 = vmatprep.mubr.bf16.mxu0 0
    %743 = vmatmul.mubr.bf16.gmra.mxu0 %v614
    %v744 = vpop.f32.mrf.mxu0
    %v745 = vadd.f32 %v652, %v744
    %v746 = vpop.f32.mrf.mxu0
    %v747 = vpop.f32.mrf.mxu0
    %v748 = vadd.f32 %v652, %v747
    %v749 = vpop.f32.mrf.mxu0
    %750 = vmatprep.mubr.bf16.mxu0 0
    %751 = vmatmul.mubr.bf16.gmra.mxu0 %v615
    %v752 = vpop.f32.mrf.mxu0
    %v753 = vadd.f32 %v652, %v752
    %v754 = vpop.f32.mrf.mxu0
    %v755 = vpop.f32.mrf.mxu0
    %v756 = vadd.f32 %v652, %v755
    %v757 = vpop.f32.mrf.mxu0
    %758 = vmatprep.mubr.bf16.mxu0 0
    %759 = vmatmul.mubr.bf16.gmra.mxu0 %v616
    %v760 = vpop.f32.mrf.mxu0
    %v761 = vadd.f32 %v652, %v760
    %v762 = vpop.f32.mrf.mxu0
    %v763 = vpop.f32.mrf.mxu0
    %v764 = vadd.f32 %v652, %v763
    %v765 = vpop.f32.mrf.mxu0
    %766 = vmatprep.mubr.bf16.mxu0 0
    %767 = vmatmul.mubr.bf16.gmra.mxu0 %v617
    %v768 = vpop.f32.mrf.mxu0
    %v769 = vadd.f32 %v652, %v768
    %v770 = vpop.f32.mrf.mxu0
    %v771 = vpop.f32.mrf.mxu0
    %v772 = vadd.f32 %v652, %v771
    %v773 = vpop.f32.mrf.mxu0
    %774 = vmatprep.mubr.bf16.mxu0 0
    %775 = vmatmul.mubr.bf16.gmra.mxu0 %v618
    %v776 = vpop.f32.mrf.mxu0
    %v777 = vadd.f32 %v652, %v776
    %v778 = vpop.f32.mrf.mxu0
    %v779 = vpop.f32.mrf.mxu0
    %v780 = vadd.f32 %v652, %v779
    %v781 = vpop.f32.mrf.mxu0
    %782 = vmatprep.mubr.bf16.mxu0 0
    %783 = vmatmul.mubr.bf16.gmra.mxu0 %v619
    %v784 = vpop.f32.mrf.mxu0
    %v785 = vadd.f32 %v652, %v784
    %v786 = vpop.f32.mrf.mxu0
    %v787 = vpop.f32.mrf.mxu0
    %v788 = vadd.f32 %v652, %v787
    %v789 = vpop.f32.mrf.mxu0
    %790 = vmatprep.mubr.bf16.mxu0 0
    %791 = vmatmul.mubr.bf16.gmra.mxu0 %v620
    %v792 = vpop.f32.mrf.mxu0
    %v793 = vadd.f32 %v652, %v792
    %v794 = vpop.f32.mrf.mxu0
    %v795 = vpop.f32.mrf.mxu0
    %v796 = vadd.f32 %v652, %v795
    %v797 = vpop.f32.mrf.mxu0
    %798 = vmatprep.mubr.bf16.mxu0 0
    %799 = vmatmul.mubr.bf16.gmra.mxu0 %v621
    %v800 = vpop.f32.mrf.mxu0
    %v801 = vadd.f32 %v652, %v800
    %v802 = vpop.f32.mrf.mxu0
    %v803 = vpop.f32.mrf.mxu0
    %v804 = vadd.f32 %v652, %v803
    %v805 = vpop.f32.mrf.mxu0
    %806 = vmatprep.mubr.bf16.mxu0 0
    %807 = vmatmul.mubr.bf16.gmra.mxu0 %v622
    %v808 = vpop.f32.mrf.mxu0
    %v809 = vadd.f32 %v652, %v808
    %v810 = vpop.f32.mrf.mxu0
    %v811 = vpop.f32.mrf.mxu0
    %v812 = vadd.f32 %v652, %v811
    %v813 = vpop.f32.mrf.mxu0
    %814 = vmatprep.mubr.bf16.mxu0 0
    %815 = vmatmul.mubr.bf16.gmra.mxu0 %v623
    %v816 = vpop.f32.mrf.mxu0
    %v817 = vadd.f32 %v652, %v816
    %v818 = vpop.f32.mrf.mxu0
    %v819 = vpop.f32.mrf.mxu0
    %v820 = vadd.f32 %v652, %v819
    %v821 = vpop.f32.mrf.mxu0
    %822 = vmatprep.mubr.bf16.mxu0 0
    %823 = vmatmul.mubr.bf16.gmra.mxu0 %v624
    %v824 = vpop.f32.mrf.mxu0
    %v825 = vadd.f32 %v652, %v824
    %v826 = vpop.f32.mrf.mxu0
    %v827 = vpop.f32.mrf.mxu0
    %v828 = vadd.f32 %v652, %v827
    %v829 = vpop.f32.mrf.mxu0
    %830 = vmatprep.mubr.bf16.mxu0 0
    %831 = vmatmul.mubr.bf16.gmra.mxu0 %v625
    %v832 = vpop.f32.mrf.mxu0
    %v833 = vadd.f32 %v652, %v832
    %v834 = vpop.f32.mrf.mxu0
    %v835 = vpop.f32.mrf.mxu0
    %v836 = vadd.f32 %v652, %v835
    %v837 = vpop.f32.mrf.mxu0
    %838 = vmatprep.mubr.bf16.mxu0 0
    %839 = vmatmul.mubr.bf16.gmra.mxu0 %v626
    %v840 = vpop.f32.mrf.mxu0
    %v841 = vadd.f32 %v652, %v840
    %v842 = vpop.f32.mrf.mxu0
    %v843 = vpop.f32.mrf.mxu0
    %v844 = vadd.f32 %v652, %v843
    %v845 = vpop.f32.mrf.mxu0
    %846 = vmatprep.mubr.bf16.mxu0 0
    %847 = vmatmul.mubr.bf16.gmra.mxu0 %v627
    %v848 = vpop.f32.mrf.mxu0
    %v849 = vadd.f32 %v652, %v848
    %v850 = vpop.f32.mrf.mxu0
    %v851 = vpop.f32.mrf.mxu0
    %v852 = vadd.f32 %v652, %v851
    %v853 = vpop.f32.mrf.mxu0
    %854 = vmatprep.mubr.bf16.mxu0 0
    %855 = vmatmul.mubr.bf16.gmra.mxu0 %v628
    %v856 = vpop.f32.mrf.mxu0
    %v857 = vadd.f32 %v652, %v856
    %v858 = vpop.f32.mrf.mxu0
    %v859 = vpop.f32.mrf.mxu0
    %v860 = vadd.f32 %v652, %v859
    %v861 = vpop.f32.mrf.mxu0
    %862 = vdwg.mxu0
    %v863 = vmax.f32 %v737, 0.0
    %v864 = vmax.f32 %v740, 0.0
    %v865 = vmax.f32 %v745, 0.0
    %v866 = vmax.f32 %v748, 0.0
    %v867 = vmax.f32 %v753, 0.0
    %v868 = vmax.f32 %v756, 0.0
    %v869 = vmax.f32 %v761, 0.0
    %v870 = vmax.f32 %v764, 0.0
    %v871 = vmax.f32 %v769, 0.0
    %v872 = vmax.f32 %v772, 0.0
    %v873 = vmax.f32 %v777, 0.0
    %v874 = vmax.f32 %v780, 0.0
    %v875 = vmax.f32 %v785, 0.0
    %v876 = vmax.f32 %v788, 0.0
    %v877 = vmax.f32 %v793, 0.0
    %v878 = vmax.f32 %v796, 0.0
    %v879 = vmax.f32 %v801, 0.0
    %v880 = vmax.f32 %v804, 0.0
    %v881 = vmax.f32 %v809, 0.0
    %v882 = vmax.f32 %v812, 0.0
    %v883 = vmax.f32 %v817, 0.0
    %v884 = vmax.f32 %v820, 0.0
    %v885 = vmax.f32 %v825, 0.0
    %v886 = vmax.f32 %v828, 0.0
    %v887 = vmax.f32 %v833, 0.0
    %v888 = vmax.f32 %v836, 0.0
    %v889 = vmax.f32 %v841, 0.0
    %v890 = vmax.f32 %v844, 0.0
    %v891 = vmax.f32 %v849, 0.0
    %v892 = vmax.f32 %v852, 0.0
    %v893 = vmax.f32 %v857, 0.0
    %v894 = vmax.f32 %v860, 0.0
    %v895 = vpack.c.bf16 %v864, %v863
    %v896 = vpack.c.bf16 %v866, %v865
    %v897 = vpack.c.bf16 %v868, %v867
    %v898 = vpack.c.bf16 %v870, %v869
    %v899 = vpack.c.bf16 %v872, %v871
    %v900 = vpack.c.bf16 %v874, %v873
    %v901 = vpack.c.bf16 %v876, %v875
    %v902 = vpack.c.bf16 %v878, %v877
    %v903 = vpack.c.bf16 %v880, %v879
    %v904 = vpack.c.bf16 %v882, %v881
    %v905 = vpack.c.bf16 %v884, %v883
    %v906 = vpack.c.bf16 %v886, %v885
    %v907 = vpack.c.bf16 %v888, %v887
    %v908 = vpack.c.bf16 %v890, %v889
    %v909 = vpack.c.bf16 %v892, %v891
    %v910 = vpack.c.bf16 %v894, %v893
    %v927 = vunpack.c.l.b16 %v895
    %v928 = vunpack.c.h.b16 %v895
    %v929 = vunpack.c.l.b16 %v896
    %v930 = vunpack.c.h.b16 %v896
    %v931 = vunpack.c.l.b16 %v897
    %v932 = vunpack.c.h.b16 %v897
    %v933 = vunpack.c.l.b16 %v898
    %v934 = vunpack.c.h.b16 %v898
    %v935 = vunpack.c.l.b16 %v899
    %v936 = vunpack.c.h.b16 %v899
    %v937 = vunpack.c.l.b16 %v900
    %v938 = vunpack.c.h.b16 %v900
    %v939 = vunpack.c.l.b16 %v901
    %v940 = vunpack.c.h.b16 %v901
    %v941 = vunpack.c.l.b16 %v902
    %v942 = vunpack.c.h.b16 %v902
    %v943 = vunpack.c.l.b16 %v903
    %v944 = vunpack.c.h.b16 %v903
    %v945 = vunpack.c.l.b16 %v904
    %v946 = vunpack.c.h.b16 %v904
    %v947 = vunpack.c.l.b16 %v905
    %v948 = vunpack.c.h.b16 %v905
    %v949 = vunpack.c.l.b16 %v906
    %v950 = vunpack.c.h.b16 %v906
    %v951 = vunpack.c.l.b16 %v907
    %v952 = vunpack.c.h.b16 %v907
    %v953 = vunpack.c.l.b16 %v908
    %v954 = vunpack.c.h.b16 %v908
    %v955 = vunpack.c.l.b16 %v909
    %v956 = vunpack.c.h.b16 %v909
    %v957 = vunpack.c.l.b16 %v910
    %v958 = vunpack.c.h.b16 %v910
    %v959 = vpack.c.b16 %v927, %v927
    %v960 = vpack.c.b16 %v928, %v928
    %v961 = vpack.c.b16 %v929, %v929
    %v962 = vpack.c.b16 %v930, %v930
    %v963 = vpack.c.b16 %v931, %v931
    %v964 = vpack.c.b16 %v932, %v932
    %v965 = vpack.c.b16 %v933, %v933
    %v966 = vpack.c.b16 %v934, %v934
    %v967 = vpack.c.b16 %v935, %v935
    %v968 = vpack.c.b16 %v936, %v936
    %v969 = vpack.c.b16 %v937, %v937
    %v970 = vpack.c.b16 %v938, %v938
    %v971 = vpack.c.b16 %v939, %v939
    %v972 = vpack.c.b16 %v940, %v940
    %v973 = vpack.c.b16 %v941, %v941
    %v974 = vpack.c.b16 %v942, %v942
    %v975 = vpack.c.b16 %v943, %v943
    %v976 = vpack.c.b16 %v944, %v944
    %v977 = vpack.c.b16 %v945, %v945
    %v978 = vpack.c.b16 %v946, %v946
    %v979 = vpack.c.b16 %v947, %v947
    %v980 = vpack.c.b16 %v948, %v948
    %v981 = vpack.c.b16 %v949, %v949
    %v982 = vpack.c.b16 %v950, %v950
    %v983 = vpack.c.b16 %v951, %v951
    %v984 = vpack.c.b16 %v952, %v952
    %v985 = vpack.c.b16 %v953, %v953
    %v986 = vpack.c.b16 %v954, %v954
    %v987 = vpack.c.b16 %v955, %v955
    %v988 = vpack.c.b16 %v956, %v956
    %v989 = vpack.c.b16 %v957, %v957
    %v990 = vpack.c.b16 %v958, %v958
    %1023 = vst [vmem:[#allocation2] sm:$0xf] %v959
    %1024 = vst [vmem:[#allocation2 + $0x4] sm:$0xf] %v960
    %1025 = vst [vmem:[#allocation2 + $0x8] sm:$0xf] %v961
    %1026 = vst [vmem:[#allocation2 + $0xc] sm:$0xf] %v962
    %1027 = vst [vmem:[#allocation2 + $0x10] sm:$0xf] %v963
    %1028 = vst [vmem:[#allocation2 + $0x14] sm:$0xf] %v964
    %1029 = vst [vmem:[#allocation2 + $0x18] sm:$0xf] %v965
    %1030 = vst [vmem:[#allocation2 + $0x1c] sm:$0xf] %v966
    %1031 = vst [vmem:[#allocation2 + $0x20] sm:$0xf] %v967
    %1032 = vst [vmem:[#allocation2 + $0x24] sm:$0xf] %v968
    %1033 = vst [vmem:[#allocation2 + $0x28] sm:$0xf] %v969
    %1034 = vst [vmem:[#allocation2 + $0x2c] sm:$0xf] %v970
    %1035 = vst [vmem:[#allocation2 + $0x30] sm:$0xf] %v971
    %1036 = vst [vmem:[#allocation2 + $0x34] sm:$0xf] %v972
    %1037 = vst [vmem:[#allocation2 + $0x38] sm:$0xf] %v973
    %1038 = vst [vmem:[#allocation2 + $0x3c] sm:$0xf] %v974
    %1039 = vst [vmem:[#allocation2 + $0x40] sm:$0xf] %v975
    %1040 = vst [vmem:[#allocation2 + $0x44] sm:$0xf] %v976
    %1041 = vst [vmem:[#allocation2 + $0x48] sm:$0xf] %v977
    %1042 = vst [vmem:[#allocation2 + $0x4c] sm:$0xf] %v978
    %1043 = vst [vmem:[#allocation2 + $0x50] sm:$0xf] %v979
    %1044 = vst [vmem:[#allocation2 + $0x54] sm:$0xf] %v980
    %1045 = vst [vmem:[#allocation2 + $0x58] sm:$0xf] %v981
    %1046 = vst [vmem:[#allocation2 + $0x5c] sm:$0xf] %v982
    %1047 = vst [vmem:[#allocation2 + $0x60] sm:$0xf] %v983
    %1048 = vst [vmem:[#allocation2 + $0x64] sm:$0xf] %v984
    %1049 = vst [vmem:[#allocation2 + $0x68] sm:$0xf] %v985
    %1050 = vst [vmem:[#allocation2 + $0x6c] sm:$0xf] %v986
    %1051 = vst [vmem:[#allocation2 + $0x70] sm:$0xf] %v987
    %1052 = vst [vmem:[#allocation2 + $0x74] sm:$0xf] %v988
    %1053 = vst [vmem:[#allocation2 + $0x78] sm:$0xf] %v989
    %1054 = vst [vmem:[#allocation2 + $0x7c] sm:$0xf] %v990
    // Predicated region
    $region18: #{tpu_custom_call.1} parent=1 // pred_check
      _
    $region19: #{tpu_custom_call.1} parent=1 // pred_check_branch
      %1056 = sbr.rel (0) target = $region21
    $region20: #{tpu_custom_call.1} parent=1 // pred_region
      %s1058 = ssub.s32 2048, 2048
      %1059 = vsyncadd [#allocation3], %s1058
      %s1060 = sshll.u32 [#allocation2], 4
      %s1061 = int_to_ptr.vmem [resolvable:$true] %s1060
      %1066 = dma.vmem_to_hbm [thread:$0]  %s1061, 2048, %s4, [#allocation3], 64, 64, 4
    $region21: #{tpu_custom_call.1} parent=1 // pred_fallthru
      _
    // Predicated region
    $region22: #{tpu_custom_call.1} parent=1 // pred_check
      _
    $region23: #{tpu_custom_call.1} parent=1 // pred_check_branch
      %1068 = sbr.rel (0) target = $region25
    $region24: #{tpu_custom_call.1} parent=1 // pred_region
      %1069 = dma.done [#allocation3], 2048
    $region25: #{tpu_custom_call.1} parent=1 // pred_fallthru
      _
    %1070 = vsyncpa [#allocation3], 1

</llo_original>
